<compile_context>
chip_gen: v7x
topology: tpu7x:2x2x1
jax: 0.10.0
libtpu: 0.0.40
codegen_flags: <defaults>
</compile_context>

<pallas_src>
import functools

import jax
import jax.numpy as jnp
from jax import lax
from jax.experimental import pallas as pl
from jax.experimental.pallas import tpu as pltpu

_MAX_TK = 4096  # default K-tile budget; sweep 1024-8192 on real encoder sizes


def _round_up(n, m):
    return ((n + m - 1) // m) * m


def _choose_k_tiling(K, max_tk=_MAX_TK):
    """Pick (tk, nk) with nk*tk >= round_up(K,128) and minimal zero padding."""
    K128 = _round_up(max(K, 1), 128)
    if K128 <= max_tk:
        return K128, 1                       # single tile, no K padding
    nk = -(-K128 // max_tk)                  # ceil-div
    tk = _round_up(-(-K128 // nk), 128)      # even 128-multiple tiles
    return tk, nk


def _vmem_limit_bytes(B_pad, C_pad, D, E_pad, tk, nk):
    nbuf = 3 if nk >= 3 else 2
    in_bytes = (B_pad * tk + tk * D) * 2 * nbuf \
             + (C_pad * E_pad + E_pad * D) * 2 * 2
    out_bytes = (B_pad * C_pad + B_pad * D + C_pad * D) * 4 * 2
    scratch = B_pad * D * 4
    est = in_bytes + out_bytes + scratch
    # Explicit limit (review): v5e scoped default is only 16 MiB; raise it when
    # large K tiles need more, but stay well under v7x's 64 MiB physical VMEM.
    return int(min(max(2 * est, 32 << 20), 48 << 20))


# ----------------------------------------------------------------------------
# One-time parameter preparation (hoisted out of the per-call path)
# ----------------------------------------------------------------------------
def prepare_clip_params(params, *, max_tk=_MAX_TK):
    """Pad + cast weights to TPU-friendly bf16 layouts once, at load time."""
    wv = params["w_visual"]                  # [K, D]
    wt = params["w_text"]                    # [E, D]
    K, D = wv.shape
    E = wt.shape[0]

    tk, nk = _choose_k_tiling(K, max_tk)
    K_pad = tk * nk
    E_pad = _round_up(E, 128)

    return {
        "wv_p": jnp.pad(wv.astype(jnp.bfloat16), ((0, K_pad - K), (0, 0))),
        "wt_p": jnp.pad(wt.astype(jnp.bfloat16), ((0, E_pad - E), (0, 0))),
        "token_emb": params["token_emb"].astype(jnp.float32),
        "exp_logit_scale": jnp.exp(params["logit_scale"].astype(jnp.float32)),
    }


# ----------------------------------------------------------------------------
# Fused Pallas kernel
# ----------------------------------------------------------------------------
def _fused_clip_kernel(scale_ref, x_ref, wv_ref, pooled_ref, wt_ref,
                       logits_ref, imgf_ref, txtf_ref, img_acc):
    k = pl.program_id(0)

    @pl.when(k == 0)
    def _():
        img_acc[...] = jnp.zeros_like(img_acc)

    # Visual projection, tiled over K: bf16 MXU matmul, f32 accumulation.
    img_acc[...] += jnp.dot(x_ref[...], wv_ref[...],
                            preferred_element_type=jnp.float32)

    @pl.when(k == pl.num_programs(0) - 1)
    def _():
        # Text projection (small; once, at the final grid step).
        txt = jnp.dot(pooled_ref[...], wt_ref[...],
                      preferred_element_type=jnp.float32)           # [Cp, D]
        img = img_acc[...]                                          # [Bp, D]

        # L2 normalization via rsqrt (EUP). The tiny eps only keeps all-zero
        # padded rows finite; real rows are unaffected (<< 1e-3 tolerance).
        img_n = img * lax.rsqrt(
            jnp.sum(img * img, axis=-1, keepdims=True) + 1e-30)
        txt_n = txt * lax.rsqrt(
            jnp.sum(txt * txt, axis=-1, keepdims=True) + 1e-30)

        scale = scale_ref[0]                                        # exp(logit_scale)

        # img_n @ txt_n.T without materializing a transpose; bf16 inputs halve
        # MXU passes on v5e/v6e, f32 accumulation keeps accuracy.
        sim = lax.dot_general(img_n.astype(jnp.bfloat16),
                              txt_n.astype(jnp.bfloat16),
                              dimension_numbers=(((1,), (1,)), ((), ())),
                              preferred_element_type=jnp.float32)   # [Bp, Cp]
        logits_ref[...] = scale * sim
        imgf_ref[...] = img_n
        txtf_ref[...] = txt_n


# ----------------------------------------------------------------------------
# Forward wrapper (glue in plain JAX, all hot-path math in one Pallas kernel)
# ----------------------------------------------------------------------------
def ori_clip_forward(image, text_input, prep, *, max_tk=_MAX_TK):
    """Equivalent of OriClip.forward(image) with the class-prompt text_input."""
    B = image.shape[0]
    x = image.reshape(B, -1)                                        # [B, K]
    K = x.shape[1]

    wv_p = prep["wv_p"]                                             # [K_pad, D] bf16
    wt_p = prep["wt_p"]                                             # [E_pad, D] bf16
    K_pad, D = wv_p.shape
    E_pad = wt_p.shape[0]

    tk, nk = _choose_k_tiling(K, max_tk)
    assert tk * nk == K_pad, "prepare_clip_params / forward max_tk mismatch"

    # Synthetic text-encoder front end: embedding gather + mean pool (XLA glue).
    emb = jnp.take(prep["token_emb"], text_input, axis=0)           # [C, T, E]
    pooled = jnp.mean(emb, axis=1)                                  # [C, E]
    C, E = pooled.shape

    # Rows to the bf16 sublane granule, classes to 128 lanes (lane-dense out).
    B_pad = _round_up(max(B, 1), 16)
    C_pad = _round_up(max(C, 1), 128)

    # Only activations are padded per call; weights were prepared once.
    x_p = jnp.pad(x.astype(jnp.bfloat16), ((0, B_pad - B), (0, K_pad - K)))
    pooled_p = jnp.pad(pooled.astype(jnp.bfloat16),
                       ((0, C_pad - C), (0, E_pad - E)))

    # Deepen the pipeline on the dominant wv HBM stream once nk is non-trivial.
    wv_spec_kwargs = dict(pipeline_mode=pl.Buffered(3)) if nk >= 3 else {}
    wv_spec = pl.BlockSpec((tk, D), lambda k: (k, 0), **wv_spec_kwargs)

    logits_p, imgf_p, txtf_p = pl.pallas_call(
        _fused_clip_kernel,
        out_shape=(
            jax.ShapeDtypeStruct((B_pad, C_pad), jnp.float32),      # logits
            jax.ShapeDtypeStruct((B_pad, D), jnp.float32),          # image feats
            jax.ShapeDtypeStruct((C_pad, D), jnp.float32),          # text feats
        ),
        grid_spec=pltpu.PrefetchScalarGridSpec(
            num_scalar_prefetch=0,
            grid=(nk,),
            in_specs=[
                pl.BlockSpec(memory_space=pltpu.MemorySpace.SMEM),  # exp(logit_scale)
                pl.BlockSpec((B_pad, tk), lambda k: (0, k)),        # image pixels (K-tiled)
                wv_spec,                                            # visual weights (K-tiled)
                pl.BlockSpec((C_pad, E_pad), lambda k: (0, 0)),     # pooled text (resident)
                pl.BlockSpec((E_pad, D), lambda k: (0, 0)),         # text weights (resident)
            ],
            out_specs=(
                pl.BlockSpec((B_pad, C_pad), lambda k: (0, 0)),
                pl.BlockSpec((B_pad, D), lambda k: (0, 0)),
                pl.BlockSpec((C_pad, D), lambda k: (0, 0)),
            ),
            scratch_shapes=[pltpu.VMEM((B_pad, D), jnp.float32)],
        ),
        compiler_params=pltpu.CompilerParams(
            dimension_semantics=("arbitrary",),                     # K is a reduction axis
            vmem_limit_bytes=_vmem_limit_bytes(B_pad, C_pad, D, E_pad, tk, nk),
        ),
    )(prep["exp_logit_scale"], x_p, wv_p, pooled_p, wt_p)

    return logits_p[:B, :C], imgf_p[:B, :], txtf_p[:C, :]


# ----------------------------------------------------------------------------
# Pure-JAX reference (same bf16 encode / bf16 similarity, f32 acc + norm)
# ----------------------------------------------------------------------------
def reference_forward(image, text_input, params):
    B = image.shape[0]
    x = image.reshape(B, -1).astype(jnp.bfloat16)
    wv = params["w_visual"].astype(jnp.bfloat16)
    emb = jnp.take(params["token_emb"], text_input, axis=0)
    pooled = jnp.mean(emb, axis=1).astype(jnp.bfloat16)
    wt = params["w_text"].astype(jnp.bfloat16)

    img = jnp.matmul(x, wv, preferred_element_type=jnp.float32)
    txt = jnp.matmul(pooled, wt, preferred_element_type=jnp.float32)
    img_n = img / jnp.linalg.norm(img, axis=-1, keepdims=True)
    txt_n = txt / jnp.linalg.norm(txt, axis=-1, keepdims=True)
    sim = jnp.matmul(img_n.astype(jnp.bfloat16), txt_n.astype(jnp.bfloat16).T,
                     preferred_element_type=jnp.float32)
    logits = jnp.exp(params["logit_scale"][0]) * sim
    return logits, img_n, txt_n


if __name__ == "__main__":
    # Small, deterministic shapes
    B, C_in, H, W = 2, 4, 16, 16          # image batch, NCHW  -> K = 1024
    num_classes, seq_len = 8, 8           # tokenized class prompts
    vocab, E, D = 64, 32, 128             # token vocab, text embed dim, CLIP dim

    key = jax.random.PRNGKey(0)
    k_img, k_wv, k_wt, k_emb, k_tok = jax.random.split(key, 5)

    image = jax.random.normal(k_img, (B, C_in, H, W), dtype=jnp.float32)
    text_input = jax.random.randint(k_tok, (num_classes, seq_len), 0, vocab,
                                    dtype=jnp.int32)

    params = {
        "w_visual": jax.random.normal(k_wv, (C_in * H * W, D), jnp.float32) * 0.02,
        "w_text": jax.random.normal(k_wt, (E, D), jnp.float32) * 0.02,
        "token_emb": jax.random.normal(k_emb, (vocab, E), jnp.float32) * 0.02,
        # CLIP initializes logit_scale = ln(1/0.07)
        "logit_scale": jnp.array([jnp.log(1.0 / 0.07)], jnp.float32),
    }

    ref_logits, ref_imgf, ref_txtf = reference_forward(image, text_input, params)

    # One-time weight prep (bf16 cast + padding + exp(logit_scale)).
    prep = prepare_clip_params(params)
    fwd = jax.jit(ori_clip_forward)
    logits, image_features, text_features = fwd(image, text_input, prep)
    jax.block_until_ready((logits, image_features, text_features))

    assert logits.shape == (B, num_classes)
    assert image_features.shape == (B, D)
    assert text_features.shape == (num_classes, D)
    assert jnp.allclose(logits, ref_logits, rtol=1e-3, atol=1e-3)
    assert jnp.allclose(image_features, ref_imgf, rtol=1e-3, atol=1e-3)
    assert jnp.allclose(text_features, ref_txtf, rtol=1e-3, atol=1e-3)

    # Also exercise the multi-tile reduction path (nk > 1, Buffered(3) wv stream).
    prep_mt = prepare_clip_params(params, max_tk=256)
    fwd_mt = jax.jit(functools.partial(ori_clip_forward, max_tk=256))
    logits2, imgf2, txtf2 = fwd_mt(image, text_input, prep_mt)
    jax.block_until_ready((logits2, imgf2, txtf2))
    assert jnp.allclose(logits2, ref_logits, rtol=1e-3, atol=1e-3)
    assert jnp.allclose(imgf2, ref_imgf, rtol=1e-3, atol=1e-3)
    assert jnp.allclose(txtf2, ref_txtf, rtol=1e-3, atol=1e-3)

    print("KERNEL_OK")
</pallas_src>

<mosaic_0001>
module attributes {stable_mosaic.version = 11 : i64} {
  func.func @_fused_clip_kernel(%arg0: i32, %arg1: memref<1xf32, #tpu.memory_space<smem>>, %arg2: memref<16x1024xbf16, #tpu.memory_space<vmem>>, %arg3: memref<1024x128xbf16, #tpu.memory_space<vmem>>, %arg4: memref<128x128xbf16, #tpu.memory_space<vmem>>, %arg5: memref<128x128xbf16, #tpu.memory_space<vmem>>, %arg6: memref<16x128xf32, #tpu.memory_space<vmem>>, %arg7: memref<16x128xf32, #tpu.memory_space<vmem>>, %arg8: memref<128x128xf32, #tpu.memory_space<vmem>>, %arg9: memref<16x128xf32, #tpu.memory_space<vmem>>) attributes {dimension_semantics = [#tpu.dimension_semantics<arbitrary>], iteration_bounds = array<i64: 1>, scalar_prefetch = 0 : i64, scratch_operands = 1 : i64, tpu.core_type = #tpu.core_type<tc>, window_params = [{transform_indices = @transform_0, window_bounds = array<i64: 1>}, {transform_indices = @transform_1, window_bounds = array<i64: 16, 1024>}, {transform_indices = @transform_2, window_bounds = array<i64: 1024, 128>}, {pipeline_mode = #tpu.pipeline_mode<synchronous>, transform_indices = @transform_3, window_bounds = array<i64: 128, 128>}, {pipeline_mode = #tpu.pipeline_mode<synchronous>, transform_indices = @transform_4, window_bounds = array<i64: 128, 128>}, {pipeline_mode = #tpu.pipeline_mode<synchronous>, transform_indices = @transform_5, window_bounds = array<i64: 16, 128>}, {pipeline_mode = #tpu.pipeline_mode<synchronous>, transform_indices = @transform_6, window_bounds = array<i64: 16, 128>}, {pipeline_mode = #tpu.pipeline_mode<synchronous>, transform_indices = @transform_7, window_bounds = array<i64: 128, 128>}]} {
    %c0_i32 = arith.constant 0 : i32
    %0 = arith.cmpi eq, %arg0, %c0_i32 : i32
    %1 = arith.extui %0 : i1 to i32
    %c0_i32_0 = arith.constant 0 : i32
    %2 = arith.cmpi ne, %1, %c0_i32_0 : i32
    scf.if %2 {
      %cst_10 = arith.constant 0.000000e+00 : f32
      %12 = vector.broadcast %cst_10 : f32 to vector<16x128xf32>
      %c0_11 = arith.constant 0 : index
      %c0_12 = arith.constant 0 : index
      %13 = vector.load %arg9[%c0_11, %c0_12] : memref<16x128xf32, #tpu.memory_space<vmem>>, vector<16x128xf32>
      tpu.vector_store %arg9[%c0_11, %c0_12], %12 {strides = array<i32>} : memref<16x128xf32, #tpu.memory_space<vmem>>, vector<16x128xf32>,
    } else {
    }
    %c0 = arith.constant 0 : index
    %c0_1 = arith.constant 0 : index
    %3 = vector.load %arg9[%c0, %c0_1] : memref<16x128xf32, #tpu.memory_space<vmem>>, vector<16x128xf32>
    %c0_2 = arith.constant 0 : index
    %c0_3 = arith.constant 0 : index
    %4 = vector.load %arg2[%c0_2, %c0_3] : memref<16x1024xbf16, #tpu.memory_space<vmem>>, vector<16x1024xbf16>
    %c0_4 = arith.constant 0 : index
    %c0_5 = arith.constant 0 : index
    %5 = vector.load %arg3[%c0_4, %c0_5] : memref<1024x128xbf16, #tpu.memory_space<vmem>>, vector<1024x128xbf16>
    %cst = arith.constant dense<0.000000e+00> : vector<16x128xf32>
    %6 = tpu.matmul %4, %5, %cst {dimension_numbers = #tpu.dot_dimension_numbers<[1], [0], [0], [1], [0, 0, 1, 1], [], []>} : vector<16x1024xbf16>, vector<1024x128xbf16>, vector<16x128xf32> -> vector<16x128xf32>
    %7 = arith.addf %3, %6 : vector<16x128xf32>
    %c0_6 = arith.constant 0 : index
    %c0_7 = arith.constant 0 : index
    %8 = vector.load %arg9[%c0_6, %c0_7] : memref<16x128xf32, #tpu.memory_space<vmem>>, vector<16x128xf32>
    tpu.vector_store %arg9[%c0_6, %c0_7], %7 {strides = array<i32>} : memref<16x128xf32, #tpu.memory_space<vmem>>, vector<16x128xf32>,
    %c0_i32_8 = arith.constant 0 : i32
    %9 = arith.cmpi eq, %arg0, %c0_i32_8 : i32
    %10 = arith.extui %9 : i1 to i32
    %c0_i32_9 = arith.constant 0 : i32
    %11 = arith.cmpi ne, %10, %c0_i32_9 : i32
    scf.if %11 {
      %c0_10 = arith.constant 0 : index
      %c0_11 = arith.constant 0 : index
      %12 = vector.load %arg4[%c0_10, %c0_11] : memref<128x128xbf16, #tpu.memory_space<vmem>>, vector<128x128xbf16>
      %c0_12 = arith.constant 0 : index
      %c0_13 = arith.constant 0 : index
      %13 = vector.load %arg5[%c0_12, %c0_13] : memref<128x128xbf16, #tpu.memory_space<vmem>>, vector<128x128xbf16>
      %cst_14 = arith.constant dense<0.000000e+00> : vector<128x128xf32>
      %14 = tpu.matmul %12, %13, %cst_14 {dimension_numbers = #tpu.dot_dimension_numbers<[1], [0], [0], [1], [0, 0, 1, 1], [], []>} : vector<128x128xbf16>, vector<128x128xbf16>, vector<128x128xf32> -> vector<128x128xf32>
      %c0_15 = arith.constant 0 : index
      %c0_16 = arith.constant 0 : index
      %15 = vector.load %arg9[%c0_15, %c0_16] : memref<16x128xf32, #tpu.memory_space<vmem>>, vector<16x128xf32>
      %16 = arith.mulf %15, %15 : vector<16x128xf32>
      %cst_17 = arith.constant dense<0.000000e+00> : vector<16xf32>
      %17 = vector.multi_reduction <add>, %16, %cst_17 [1] : vector<16x128xf32> to vector<16xf32>
      %18 = vector.shape_cast %17 : vector<16xf32> to vector<16x1xf32>
      %cst_18 = arith.constant 1.000000e-30 : f32
      %19 = vector.broadcast %cst_18 : f32 to vector<16x1xf32>
      %20 = arith.addf %18, %19 : vector<16x1xf32>
      %21 = math.rsqrt %20 : vector<16x1xf32>
      %22 = vector.broadcast %21 : vector<16x1xf32> to vector<16x128xf32>
      %23 = arith.mulf %15, %22 : vector<16x128xf32>
      %24 = arith.mulf %14, %14 : vector<128x128xf32>
      %cst_19 = arith.constant dense<0.000000e+00> : vector<128xf32>
      %25 = vector.multi_reduction <add>, %24, %cst_19 [1] : vector<128x128xf32> to vector<128xf32>
      %26 = vector.shape_cast %25 : vector<128xf32> to vector<128x1xf32>
      %cst_20 = arith.constant 1.000000e-30 : f32
      %27 = vector.broadcast %cst_20 : f32 to vector<128x1xf32>
      %28 = arith.addf %26, %27 : vector<128x1xf32>
      %29 = math.rsqrt %28 : vector<128x1xf32>
      %30 = vector.broadcast %29 : vector<128x1xf32> to vector<128x128xf32>
      %31 = arith.mulf %14, %30 : vector<128x128xf32>
      %c0_21 = arith.constant 0 : index
      %32 = memref.load %arg1[%c0_21] : memref<1xf32, #tpu.memory_space<smem>>
      %33 = arith.truncf %23 : vector<16x128xf32> to vector<16x128xbf16>
      %34 = arith.truncf %31 : vector<128x128xf32> to vector<128x128xbf16>
      %cst_22 = arith.constant dense<0.000000e+00> : vector<16x128xf32>
      %35 = tpu.matmul %33, %34, %cst_22 {dimension_numbers = #tpu.dot_dimension_numbers<[1], [1], [0], [0], [0, 0, 1, 0], [], []>} : vector<16x128xbf16>, vector<128x128xbf16>, vector<16x128xf32> -> vector<16x128xf32>
      %36 = vector.broadcast %32 : f32 to vector<16x128xf32>
      %37 = arith.mulf %36, %35 : vector<16x128xf32>
      %c0_23 = arith.constant 0 : index
      %c0_24 = arith.constant 0 : index
      %38 = vector.load %arg6[%c0_23, %c0_24] : memref<16x128xf32, #tpu.memory_space<vmem>>, vector<16x128xf32>
      tpu.vector_store %arg6[%c0_23, %c0_24], %37 {strides = array<i32>} : memref<16x128xf32, #tpu.memory_space<vmem>>, vector<16x128xf32>,
      %c0_25 = arith.constant 0 : index
      %c0_26 = arith.constant 0 : index
      %39 = vector.load %arg7[%c0_25, %c0_26] : memref<16x128xf32, #tpu.memory_space<vmem>>, vector<16x128xf32>
      tpu.vector_store %arg7[%c0_25, %c0_26], %23 {strides = array<i32>} : memref<16x128xf32, #tpu.memory_space<vmem>>, vector<16x128xf32>,
      %c0_27 = arith.constant 0 : index
      %c0_28 = arith.constant 0 : index
      %40 = vector.load %arg8[%c0_27, %c0_28] : memref<128x128xf32, #tpu.memory_space<vmem>>, vector<128x128xf32>
      tpu.vector_store %arg8[%c0_27, %c0_28], %31 {strides = array<i32>} : memref<128x128xf32, #tpu.memory_space<vmem>>, vector<128x128xf32>,
    } else {
    }
    return
  }
  func.func @transform_0(%arg0: i32) -> i32 {
    %c0_i32 = arith.constant 0 : i32
    %c0_i32_0 = arith.constant 0 : i32
    return %c0_i32 : i32
  }
  func.func @transform_1(%arg0: i32) -> (i32, i32) {
    %c0_i32 = arith.constant 0 : i32
    %c0_i32_0 = arith.constant 0 : i32
    return %c0_i32, %arg0 : i32, i32
  }
  func.func @transform_2(%arg0: i32) -> (i32, i32) {
    %c0_i32 = arith.constant 0 : i32
    %c0_i32_0 = arith.constant 0 : i32
    return %arg0, %c0_i32 : i32, i32
  }
  func.func @transform_3(%arg0: i32) -> (i32, i32) {
    %c0_i32 = arith.constant 0 : i32
    %c0_i32_0 = arith.constant 0 : i32
    %c0_i32_1 = arith.constant 0 : i32
    return %c0_i32, %c0_i32_0 : i32, i32
  }
  func.func @transform_4(%arg0: i32) -> (i32, i32) {
    %c0_i32 = arith.constant 0 : i32
    %c0_i32_0 = arith.constant 0 : i32
    %c0_i32_1 = arith.constant 0 : i32
    return %c0_i32, %c0_i32_0 : i32, i32
  }
  func.func @transform_5(%arg0: i32) -> (i32, i32) {
    %c0_i32 = arith.constant 0 : i32
    %c0_i32_0 = arith.constant 0 : i32
    %c0_i32_1 = arith.constant 0 : i32
    return %c0_i32, %c0_i32_0 : i32, i32
  }
  func.func @transform_6(%arg0: i32) -> (i32, i32) {
    %c0_i32 = arith.constant 0 : i32
    %c0_i32_0 = arith.constant 0 : i32
    %c0_i32_1 = arith.constant 0 : i32
    return %c0_i32, %c0_i32_0 : i32, i32
  }
  func.func @transform_7(%arg0: i32) -> (i32, i32) {
    %c0_i32 = arith.constant 0 : i32
    %c0_i32_0 = arith.constant 0 : i32
    %c0_i32_1 = arith.constant 0 : i32
    return %c0_i32, %c0_i32_0 : i32, i32
  }
}

</mosaic_0001>

<llo_original>
// kernel: ori_clip_forward.1
$region0: #{ori_clip_forward.1}
  #allocation0 [shape = 'u32[]', space=smem, size = 0x4, offset = 0x4, fixed_abs, tag = 'smem constant byte address 0x4 - core index']
  #allocation1 [shape = 'u32[144,128]{1,0:T(1,128)}', space=vmem, size = 0x12000, scoped, tag = 'internal scratch']
  #allocation2 [shape = 'f32[16,128]{1,0:T(8,128)}', space=vmem, size = 0x2000, scoped, tag = 'scratch operand']
  #allocation3 [shape = 'f32[1]{0:T(128)S(6)}', space=smem, size = 0x200, scoped, tag = 'scoped memory for ori_clip_forward.1']
  %s0 = inlined_call_operand.<no memory space> [shape: f32[1], index: 0, kind: input, shape index: {}]
  %s1 = inlined_call_operand.vmem [shape: bf16[16,1024], index: 1, kind: input, shape index: {}]
  %s2 = inlined_call_operand.vmem [shape: bf16[1024,128], index: 2, kind: input, shape index: {}]
  %s3 = inlined_call_operand.vmem [shape: bf16[128,128], index: 3, kind: input, shape index: {}]
  %s4 = inlined_call_operand.vmem [shape: bf16[128,128], index: 4, kind: input, shape index: {}]
  %s5 = inlined_call_operand.vmem [shape: f32[16,128], index: 5, kind: output, shape index: {0}]
  %s6 = inlined_call_operand.vmem [shape: f32[16,128], index: 6, kind: output, shape index: {1}]
  %s7 = inlined_call_operand.vmem [shape: f32[128,128], index: 7, kind: output, shape index: {2}]
  %8 = xla_tuple %s5, %s6, %s7
  %s9 = sld [smem:[#allocation0]]
  $region54: #{ori_clip_forward.1} parent=0
    _
  %s11 = ssub.s32 1, %s9
  %s12 = scalar_select 0, %s11, %s9
  %13 = sst [smem:[#allocation3]] %s0
  // Predicated region
  $region2: #{ori_clip_forward.1} parent=0 // pred_check
    _
  $region3: #{ori_clip_forward.1} parent=0 // pred_check_branch
    %15 = sbr.rel (0) target = $region5
  $region4: #{ori_clip_forward.1} parent=0 // pred_region
    _
  $region5: #{ori_clip_forward.1} parent=0 // pred_fallthru
    _
  // Predicated region
  $region6: #{ori_clip_forward.1} parent=0 // pred_check
    _
  $region7: #{ori_clip_forward.1} parent=0 // pred_check_branch
    %17 = sbr.rel (0) target = $region9
  $region8: #{ori_clip_forward.1} parent=0 // pred_region
    _
  $region9: #{ori_clip_forward.1} parent=0 // pred_fallthru
    _
  // Predicated region
  $region10: #{ori_clip_forward.1} parent=0 // pred_check
    _
  $region11: #{ori_clip_forward.1} parent=0 // pred_check_branch
    %19 = sbr.rel (0) target = $region13
  $region12: #{ori_clip_forward.1} parent=0 // pred_region
    _
  $region13: #{ori_clip_forward.1} parent=0 // pred_fallthru
    _
  // Predicated region
  $region14: #{ori_clip_forward.1} parent=0 // pred_check
    _
  $region15: #{ori_clip_forward.1} parent=0 // pred_check_branch
    %21 = sbr.rel (0) target = $region17
  $region16: #{ori_clip_forward.1} parent=0 // pred_region
    _
  $region17: #{ori_clip_forward.1} parent=0 // pred_fallthru
    _
  // Predicated region
  $region18: #{ori_clip_forward.1} parent=0 // pred_check
    _
  $region19: #{ori_clip_forward.1} parent=0 // pred_check_branch
    %23 = sbr.rel (0) target = $region21
  $region20: #{ori_clip_forward.1} parent=0 // pred_region
    _
  $region21: #{ori_clip_forward.1} parent=0 // pred_fallthru
    _
  %p25 = scmp.eq.s32.totalorder 0, 0
  // Predicated region
  $region22: #{ori_clip_forward.1} parent=0 // pred_check
    %p26 = pneg %p25
  $region23: #{ori_clip_forward.1} parent=0 // pred_check_branch
    %28 = sbr.rel (%p26) target = $region25
  $region24: #{ori_clip_forward.1} parent=0 // pred_region
    %29 = vst [vmem:[#allocation2] sm:$0xff] 0.0
    %30 = vst [vmem:[#allocation2 + $0x8] sm:$0xff] 0.0
  $region25: #{ori_clip_forward.1} parent=0 // pred_fallthru
    _
  %v31 = vld [vmem:[#allocation2] sm:$0xff]
  %v32 = vld [vmem:[#allocation2 + $0x8] sm:$0xff]
  %v33 = vld [vmem:[%s1] sm:$0xff]
  %v34 = vld [vmem:[%s1 + $0x8] sm:$0xff]
  %v35 = vld [vmem:[%s1 + $0x10] sm:$0xff]
  %v36 = vld [vmem:[%s1 + $0x18] sm:$0xff]
  %v37 = vld [vmem:[%s1 + $0x20] sm:$0xff]
  %v38 = vld [vmem:[%s1 + $0x28] sm:$0xff]
  %v39 = vld [vmem:[%s1 + $0x30] sm:$0xff]
  %v40 = vld [vmem:[%s1 + $0x38] sm:$0xff]
  %v41 = vld [vmem:[%s2] sm:$0xf]
  %v42 = vld [vmem:[%s2 + $0x4] sm:$0xf]
  %v43 = vld [vmem:[%s2 + $0x8] sm:$0xf]
  %v44 = vld [vmem:[%s2 + $0xc] sm:$0xf]
  %v45 = vld [vmem:[%s2 + $0x10] sm:$0xf]
  %v46 = vld [vmem:[%s2 + $0x14] sm:$0xf]
  %v47 = vld [vmem:[%s2 + $0x18] sm:$0xf]
  %v48 = vld [vmem:[%s2 + $0x1c] sm:$0xf]
  %v49 = vld [vmem:[%s2 + $0x20] sm:$0xf]
  %v50 = vld [vmem:[%s2 + $0x24] sm:$0xf]
  %v51 = vld [vmem:[%s2 + $0x28] sm:$0xf]
  %v52 = vld [vmem:[%s2 + $0x2c] sm:$0xf]
  %v53 = vld [vmem:[%s2 + $0x30] sm:$0xf]
  %v54 = vld [vmem:[%s2 + $0x34] sm:$0xf]
  %v55 = vld [vmem:[%s2 + $0x38] sm:$0xf]
  %v56 = vld [vmem:[%s2 + $0x3c] sm:$0xf]
  %v57 = vld [vmem:[%s2 + $0x40] sm:$0xf]
  %v58 = vld [vmem:[%s2 + $0x44] sm:$0xf]
  %v59 = vld [vmem:[%s2 + $0x48] sm:$0xf]
  %v60 = vld [vmem:[%s2 + $0x4c] sm:$0xf]
  %v61 = vld [vmem:[%s2 + $0x50] sm:$0xf]
  %v62 = vld [vmem:[%s2 + $0x54] sm:$0xf]
  %v63 = vld [vmem:[%s2 + $0x58] sm:$0xf]
  %v64 = vld [vmem:[%s2 + $0x5c] sm:$0xf]
  %v65 = vld [vmem:[%s2 + $0x60] sm:$0xf]
  %v66 = vld [vmem:[%s2 + $0x64] sm:$0xf]
  %v67 = vld [vmem:[%s2 + $0x68] sm:$0xf]
  %v68 = vld [vmem:[%s2 + $0x6c] sm:$0xf]
  %v69 = vld [vmem:[%s2 + $0x70] sm:$0xf]
  %v70 = vld [vmem:[%s2 + $0x74] sm:$0xf]
  %v71 = vld [vmem:[%s2 + $0x78] sm:$0xf]
  %v72 = vld [vmem:[%s2 + $0x7c] sm:$0xf]
  %v73 = vld [vmem:[%s2 + $0x80] sm:$0xf]
  %v74 = vld [vmem:[%s2 + $0x84] sm:$0xf]
  %v75 = vld [vmem:[%s2 + $0x88] sm:$0xf]
  %v76 = vld [vmem:[%s2 + $0x8c] sm:$0xf]
  %v77 = vld [vmem:[%s2 + $0x90] sm:$0xf]
  %v78 = vld [vmem:[%s2 + $0x94] sm:$0xf]
  %v79 = vld [vmem:[%s2 + $0x98] sm:$0xf]
  %v80 = vld [vmem:[%s2 + $0x9c] sm:$0xf]
  %v81 = vld [vmem:[%s2 + $0xa0] sm:$0xf]
  %v82 = vld [vmem:[%s2 + $0xa4] sm:$0xf]
  %v83 = vld [vmem:[%s2 + $0xa8] sm:$0xf]
  %v84 = vld [vmem:[%s2 + $0xac] sm:$0xf]
  %v85 = vld [vmem:[%s2 + $0xb0] sm:$0xf]
  %v86 = vld [vmem:[%s2 + $0xb4] sm:$0xf]
  %v87 = vld [vmem:[%s2 + $0xb8] sm:$0xf]
  %v88 = vld [vmem:[%s2 + $0xbc] sm:$0xf]
  %v89 = vld [vmem:[%s2 + $0xc0] sm:$0xf]
  %v90 = vld [vmem:[%s2 + $0xc4] sm:$0xf]
  %v91 = vld [vmem:[%s2 + $0xc8] sm:$0xf]
  %v92 = vld [vmem:[%s2 + $0xcc] sm:$0xf]
  %v93 = vld [vmem:[%s2 + $0xd0] sm:$0xf]
  %v94 = vld [vmem:[%s2 + $0xd4] sm:$0xf]
  %v95 = vld [vmem:[%s2 + $0xd8] sm:$0xf]
  %v96 = vld [vmem:[%s2 + $0xdc] sm:$0xf]
  %v97 = vld [vmem:[%s2 + $0xe0] sm:$0xf]
  %v98 = vld [vmem:[%s2 + $0xe4] sm:$0xf]
  %v99 = vld [vmem:[%s2 + $0xe8] sm:$0xf]
  %v100 = vld [vmem:[%s2 + $0xec] sm:$0xf]
  %v101 = vld [vmem:[%s2 + $0xf0] sm:$0xf]
  %v102 = vld [vmem:[%s2 + $0xf4] sm:$0xf]
  %v103 = vld [vmem:[%s2 + $0xf8] sm:$0xf]
  %v104 = vld [vmem:[%s2 + $0xfc] sm:$0xf]
  %v105 = vld [vmem:[%s2 + $0x100] sm:$0xf]
  %v106 = vld [vmem:[%s2 + $0x104] sm:$0xf]
  %v107 = vld [vmem:[%s2 + $0x108] sm:$0xf]
  %v108 = vld [vmem:[%s2 + $0x10c] sm:$0xf]
  %v109 = vld [vmem:[%s2 + $0x110] sm:$0xf]
  %v110 = vld [vmem:[%s2 + $0x114] sm:$0xf]
  %v111 = vld [vmem:[%s2 + $0x118] sm:$0xf]
  %v112 = vld [vmem:[%s2 + $0x11c] sm:$0xf]
  %v113 = vld [vmem:[%s2 + $0x120] sm:$0xf]
  %v114 = vld [vmem:[%s2 + $0x124] sm:$0xf]
  %v115 = vld [vmem:[%s2 + $0x128] sm:$0xf]
  %v116 = vld [vmem:[%s2 + $0x12c] sm:$0xf]
  %v117 = vld [vmem:[%s2 + $0x130] sm:$0xf]
  %v118 = vld [vmem:[%s2 + $0x134] sm:$0xf]
  %v119 = vld [vmem:[%s2 + $0x138] sm:$0xf]
  %v120 = vld [vmem:[%s2 + $0x13c] sm:$0xf]
  %v121 = vld [vmem:[%s2 + $0x140] sm:$0xf]
  %v122 = vld [vmem:[%s2 + $0x144] sm:$0xf]
  %v123 = vld [vmem:[%s2 + $0x148] sm:$0xf]
  %v124 = vld [vmem:[%s2 + $0x14c] sm:$0xf]
  %v125 = vld [vmem:[%s2 + $0x150] sm:$0xf]
  %v126 = vld [vmem:[%s2 + $0x154] sm:$0xf]
  %v127 = vld [vmem:[%s2 + $0x158] sm:$0xf]
  %v128 = vld [vmem:[%s2 + $0x15c] sm:$0xf]
  %v129 = vld [vmem:[%s2 + $0x160] sm:$0xf]
  %v130 = vld [vmem:[%s2 + $0x164] sm:$0xf]
  %v131 = vld [vmem:[%s2 + $0x168] sm:$0xf]
  %v132 = vld [vmem:[%s2 + $0x16c] sm:$0xf]
  %v133 = vld [vmem:[%s2 + $0x170] sm:$0xf]
  %v134 = vld [vmem:[%s2 + $0x174] sm:$0xf]
  %v135 = vld [vmem:[%s2 + $0x178] sm:$0xf]
  %v136 = vld [vmem:[%s2 + $0x17c] sm:$0xf]
  %v137 = vld [vmem:[%s2 + $0x180] sm:$0xf]
  %v138 = vld [vmem:[%s2 + $0x184] sm:$0xf]
  %v139 = vld [vmem:[%s2 + $0x188] sm:$0xf]
  %v140 = vld [vmem:[%s2 + $0x18c] sm:$0xf]
  %v141 = vld [vmem:[%s2 + $0x190] sm:$0xf]
  %v142 = vld [vmem:[%s2 + $0x194] sm:$0xf]
  %v143 = vld [vmem:[%s2 + $0x198] sm:$0xf]
  %v144 = vld [vmem:[%s2 + $0x19c] sm:$0xf]
  %v145 = vld [vmem:[%s2 + $0x1a0] sm:$0xf]
  %v146 = vld [vmem:[%s2 + $0x1a4] sm:$0xf]
  %v147 = vld [vmem:[%s2 + $0x1a8] sm:$0xf]
  %v148 = vld [vmem:[%s2 + $0x1ac] sm:$0xf]
  %v149 = vld [vmem:[%s2 + $0x1b0] sm:$0xf]
  %v150 = vld [vmem:[%s2 + $0x1b4] sm:$0xf]
  %v151 = vld [vmem:[%s2 + $0x1b8] sm:$0xf]
  %v152 = vld [vmem:[%s2 + $0x1bc] sm:$0xf]
  %v153 = vld [vmem:[%s2 + $0x1c0] sm:$0xf]
  %v154 = vld [vmem:[%s2 + $0x1c4] sm:$0xf]
  %v155 = vld [vmem:[%s2 + $0x1c8] sm:$0xf]
  %v156 = vld [vmem:[%s2 + $0x1cc] sm:$0xf]
  %v157 = vld [vmem:[%s2 + $0x1d0] sm:$0xf]
  %v158 = vld [vmem:[%s2 + $0x1d4] sm:$0xf]
  %v159 = vld [vmem:[%s2 + $0x1d8] sm:$0xf]
  %v160 = vld [vmem:[%s2 + $0x1dc] sm:$0xf]
  %v161 = vld [vmem:[%s2 + $0x1e0] sm:$0xf]
  %v162 = vld [vmem:[%s2 + $0x1e4] sm:$0xf]
  %v163 = vld [vmem:[%s2 + $0x1e8] sm:$0xf]
  %v164 = vld [vmem:[%s2 + $0x1ec] sm:$0xf]
  %v165 = vld [vmem:[%s2 + $0x1f0] sm:$0xf]
  %v166 = vld [vmem:[%s2 + $0x1f4] sm:$0xf]
  %v167 = vld [vmem:[%s2 + $0x1f8] sm:$0xf]
  %v168 = vld [vmem:[%s2 + $0x1fc] sm:$0xf]
  %v177 = vunpack.c.l.b16 %v33
  %v178 = vunpack.c.h.b16 %v33
  %v179 = vunpack.c.l.b16 %v34
  %v180 = vunpack.c.h.b16 %v34
  %v181 = vunpack.c.l.b16 %v35
  %v182 = vunpack.c.h.b16 %v35
  %v183 = vunpack.c.l.b16 %v36
  %v184 = vunpack.c.h.b16 %v36
  %v185 = vunpack.c.l.b16 %v37
  %v186 = vunpack.c.h.b16 %v37
  %v187 = vunpack.c.l.b16 %v38
  %v188 = vunpack.c.h.b16 %v38
  %v189 = vunpack.c.l.b16 %v39
  %v190 = vunpack.c.h.b16 %v39
  %v191 = vunpack.c.l.b16 %v40
  %v192 = vunpack.c.h.b16 %v40
  %v193 = vpack.c.b16 %v185, %v177
  %v194 = vpack.c.b16 %v186, %v178
  %v195 = vpack.c.b16 %v187, %v179
  %v196 = vpack.c.b16 %v188, %v180
  %v197 = vpack.c.b16 %v189, %v181
  %v198 = vpack.c.b16 %v190, %v182
  %v199 = vpack.c.b16 %v191, %v183
  %v200 = vpack.c.b16 %v192, %v184
  %v337 = vunpack.c.l.b16 %v41
  %v338 = vunpack.c.l.b16 %v42
  %v339 = vunpack.c.l.b16 %v43
  %v340 = vunpack.c.l.b16 %v44
  %v341 = vunpack.c.l.b16 %v45
  %v342 = vunpack.c.l.b16 %v46
  %v343 = vunpack.c.l.b16 %v47
  %v344 = vunpack.c.l.b16 %v48
  %v345 = vunpack.c.l.b16 %v49
  %v346 = vunpack.c.l.b16 %v50
  %v347 = vunpack.c.l.b16 %v51
  %v348 = vunpack.c.l.b16 %v52
  %v349 = vunpack.c.l.b16 %v53
  %v350 = vunpack.c.l.b16 %v54
  %v351 = vunpack.c.l.b16 %v55
  %v352 = vunpack.c.l.b16 %v56
  %v353 = vunpack.c.l.b16 %v57
  %v354 = vunpack.c.l.b16 %v58
  %v355 = vunpack.c.l.b16 %v59
  %v356 = vunpack.c.l.b16 %v60
  %v357 = vunpack.c.l.b16 %v61
  %v358 = vunpack.c.l.b16 %v62
  %v359 = vunpack.c.l.b16 %v63
  %v360 = vunpack.c.l.b16 %v64
  %v361 = vunpack.c.l.b16 %v65
  %v362 = vunpack.c.l.b16 %v66
  %v363 = vunpack.c.l.b16 %v67
  %v364 = vunpack.c.l.b16 %v68
  %v365 = vunpack.c.l.b16 %v69
  %v366 = vunpack.c.l.b16 %v70
  %v367 = vunpack.c.l.b16 %v71
  %v368 = vunpack.c.l.b16 %v72
  %v369 = vunpack.c.l.b16 %v73
  %v370 = vunpack.c.l.b16 %v74
  %v371 = vunpack.c.l.b16 %v75
  %v372 = vunpack.c.l.b16 %v76
  %v373 = vunpack.c.l.b16 %v77
  %v374 = vunpack.c.l.b16 %v78
  %v375 = vunpack.c.l.b16 %v79
  %v376 = vunpack.c.l.b16 %v80
  %v377 = vunpack.c.l.b16 %v81
  %v378 = vunpack.c.l.b16 %v82
  %v379 = vunpack.c.l.b16 %v83
  %v380 = vunpack.c.l.b16 %v84
  %v381 = vunpack.c.l.b16 %v85
  %v382 = vunpack.c.l.b16 %v86
  %v383 = vunpack.c.l.b16 %v87
  %v384 = vunpack.c.l.b16 %v88
  %v385 = vunpack.c.l.b16 %v89
  %v386 = vunpack.c.l.b16 %v90
  %v387 = vunpack.c.l.b16 %v91
  %v388 = vunpack.c.l.b16 %v92
  %v389 = vunpack.c.l.b16 %v93
  %v390 = vunpack.c.l.b16 %v94
  %v391 = vunpack.c.l.b16 %v95
  %v392 = vunpack.c.l.b16 %v96
  %v393 = vunpack.c.l.b16 %v97
  %v394 = vunpack.c.l.b16 %v98
  %v395 = vunpack.c.l.b16 %v99
  %v396 = vunpack.c.l.b16 %v100
  %v397 = vunpack.c.l.b16 %v101
  %v398 = vunpack.c.l.b16 %v102
  %v399 = vunpack.c.l.b16 %v103
  %v400 = vunpack.c.l.b16 %v104
  %v401 = vunpack.c.l.b16 %v105
  %v402 = vunpack.c.l.b16 %v106
  %v403 = vunpack.c.l.b16 %v107
  %v404 = vunpack.c.l.b16 %v108
  %v405 = vunpack.c.l.b16 %v109
  %v406 = vunpack.c.l.b16 %v110
  %v407 = vunpack.c.l.b16 %v111
  %v408 = vunpack.c.l.b16 %v112
  %v409 = vunpack.c.l.b16 %v113
  %v410 = vunpack.c.l.b16 %v114
  %v411 = vunpack.c.l.b16 %v115
  %v412 = vunpack.c.l.b16 %v116
  %v413 = vunpack.c.l.b16 %v117
  %v414 = vunpack.c.l.b16 %v118
  %v415 = vunpack.c.l.b16 %v119
  %v416 = vunpack.c.l.b16 %v120
  %v417 = vunpack.c.l.b16 %v121
  %v418 = vunpack.c.l.b16 %v122
  %v419 = vunpack.c.l.b16 %v123
  %v420 = vunpack.c.l.b16 %v124
  %v421 = vunpack.c.l.b16 %v125
  %v422 = vunpack.c.l.b16 %v126
  %v423 = vunpack.c.l.b16 %v127
  %v424 = vunpack.c.l.b16 %v128
  %v425 = vunpack.c.l.b16 %v129
  %v426 = vunpack.c.l.b16 %v130
  %v427 = vunpack.c.l.b16 %v131
  %v428 = vunpack.c.l.b16 %v132
  %v429 = vunpack.c.l.b16 %v133
  %v430 = vunpack.c.l.b16 %v134
  %v431 = vunpack.c.l.b16 %v135
  %v432 = vunpack.c.l.b16 %v136
  %v433 = vunpack.c.l.b16 %v137
  %v434 = vunpack.c.l.b16 %v138
  %v435 = vunpack.c.l.b16 %v139
  %v436 = vunpack.c.l.b16 %v140
  %v437 = vunpack.c.l.b16 %v141
  %v438 = vunpack.c.l.b16 %v142
  %v439 = vunpack.c.l.b16 %v143
  %v440 = vunpack.c.l.b16 %v144
  %v441 = vunpack.c.l.b16 %v145
  %v442 = vunpack.c.l.b16 %v146
  %v443 = vunpack.c.l.b16 %v147
  %v444 = vunpack.c.l.b16 %v148
  %v445 = vunpack.c.l.b16 %v149
  %v446 = vunpack.c.l.b16 %v150
  %v447 = vunpack.c.l.b16 %v151
  %v448 = vunpack.c.l.b16 %v152
  %v449 = vunpack.c.l.b16 %v153
  %v450 = vunpack.c.l.b16 %v154
  %v451 = vunpack.c.l.b16 %v155
  %v452 = vunpack.c.l.b16 %v156
  %v453 = vunpack.c.l.b16 %v157
  %v454 = vunpack.c.l.b16 %v158
  %v455 = vunpack.c.l.b16 %v159
  %v456 = vunpack.c.l.b16 %v160
  %v457 = vunpack.c.l.b16 %v161
  %v458 = vunpack.c.l.b16 %v162
  %v459 = vunpack.c.l.b16 %v163
  %v460 = vunpack.c.l.b16 %v164
  %v461 = vunpack.c.l.b16 %v165
  %v462 = vunpack.c.l.b16 %v166
  %v463 = vunpack.c.l.b16 %v167
  %v464 = vunpack.c.l.b16 %v168
  %v465 = vpack.c.b16 %v338, %v337
  %v466 = vpack.c.b16 %v340, %v339
  %v467 = vpack.c.b16 %v342, %v341
  %v468 = vpack.c.b16 %v344, %v343
  %v469 = vpack.c.b16 %v346, %v345
  %v470 = vpack.c.b16 %v348, %v347
  %v471 = vpack.c.b16 %v350, %v349
  %v472 = vpack.c.b16 %v352, %v351
  %v473 = vpack.c.b16 %v354, %v353
  %v474 = vpack.c.b16 %v356, %v355
  %v475 = vpack.c.b16 %v358, %v357
  %v476 = vpack.c.b16 %v360, %v359
  %v477 = vpack.c.b16 %v362, %v361
  %v478 = vpack.c.b16 %v364, %v363
  %v479 = vpack.c.b16 %v366, %v365
  %v480 = vpack.c.b16 %v368, %v367
  %v481 = vpack.c.b16 %v370, %v369
  %v482 = vpack.c.b16 %v372, %v371
  %v483 = vpack.c.b16 %v374, %v373
  %v484 = vpack.c.b16 %v376, %v375
  %v485 = vpack.c.b16 %v378, %v377
  %v486 = vpack.c.b16 %v380, %v379
  %v487 = vpack.c.b16 %v382, %v381
  %v488 = vpack.c.b16 %v384, %v383
  %v489 = vpack.c.b16 %v386, %v385
  %v490 = vpack.c.b16 %v388, %v387
  %v491 = vpack.c.b16 %v390, %v389
  %v492 = vpack.c.b16 %v392, %v391
  %v493 = vpack.c.b16 %v394, %v393
  %v494 = vpack.c.b16 %v396, %v395
  %v495 = vpack.c.b16 %v398, %v397
  %v496 = vpack.c.b16 %v400, %v399
  %v497 = vpack.c.b16 %v402, %v401
  %v498 = vpack.c.b16 %v404, %v403
  %v499 = vpack.c.b16 %v406, %v405
  %v500 = vpack.c.b16 %v408, %v407
  %v501 = vpack.c.b16 %v410, %v409
  %v502 = vpack.c.b16 %v412, %v411
  %v503 = vpack.c.b16 %v414, %v413
  %v504 = vpack.c.b16 %v416, %v415
  %v505 = vpack.c.b16 %v418, %v417
  %v506 = vpack.c.b16 %v420, %v419
  %v507 = vpack.c.b16 %v422, %v421
  %v508 = vpack.c.b16 %v424, %v423
  %v509 = vpack.c.b16 %v426, %v425
  %v510 = vpack.c.b16 %v428, %v427
  %v511 = vpack.c.b16 %v430, %v429
  %v512 = vpack.c.b16 %v432, %v431
  %v513 = vpack.c.b16 %v434, %v433
  %v514 = vpack.c.b16 %v436, %v435
  %v515 = vpack.c.b16 %v438, %v437
  %v516 = vpack.c.b16 %v440, %v439
  %v517 = vpack.c.b16 %v442, %v441
  %v518 = vpack.c.b16 %v444, %v443
  %v519 = vpack.c.b16 %v446, %v445
  %v520 = vpack.c.b16 %v448, %v447
  %v521 = vpack.c.b16 %v450, %v449
  %v522 = vpack.c.b16 %v452, %v451
  %v523 = vpack.c.b16 %v454, %v453
  %v524 = vpack.c.b16 %v456, %v455
  %v525 = vpack.c.b16 %v458, %v457
  %v526 = vpack.c.b16 %v460, %v459
  %v527 = vpack.c.b16 %v462, %v461
  %v528 = vpack.c.b16 %v464, %v463
  %593 = vmatprep.subr.bf16.mxu0 0
  %594 = vmatpush1.bf16.msra.mxu0 %v465
  %595 = vmatprep.subr.bf16.mxu0 0
  %596 = vmatpush1.bf16.msra.mxu0 %v466
  %597 = vmatprep.subr.bf16.mxu0 0
  %598 = vmatpush1.bf16.msra.mxu0 %v467
  %599 = vmatprep.subr.bf16.mxu0 0
  %600 = vmatpush1.bf16.msra.mxu0 %v468
  %601 = vmatprep.subr.bf16.mxu0 0
  %602 = vmatpush1.bf16.msra.mxu0 %v469
  %603 = vmatprep.subr.bf16.mxu0 0
  %604 = vmatpush1.bf16.msra.mxu0 %v470
  %605 = vmatprep.subr.bf16.mxu0 0
  %606 = vmatpush1.bf16.msra.mxu0 %v471
  %607 = vmatprep.subr.bf16.mxu0 0
  %608 = vmatpush1.bf16.msra.mxu0 %v472
  %609 = vmatprep.subr.bf16.mxu0 0
  %610 = vmatpush1.bf16.msra.mxu0 %v473
  %611 = vmatprep.subr.bf16.mxu0 0
  %612 = vmatpush1.bf16.msra.mxu0 %v474
  %613 = vmatprep.subr.bf16.mxu0 0
  %614 = vmatpush1.bf16.msra.mxu0 %v475
  %615 = vmatprep.subr.bf16.mxu0 0
  %616 = vmatpush1.bf16.msra.mxu0 %v476
  %617 = vmatprep.subr.bf16.mxu0 0
  %618 = vmatpush1.bf16.msra.mxu0 %v477
  %619 = vmatprep.subr.bf16.mxu0 0
  %620 = vmatpush1.bf16.msra.mxu0 %v478
  %621 = vmatprep.subr.bf16.mxu0 0
  %622 = vmatpush1.bf16.msra.mxu0 %v479
  %623 = vmatprep.subr.bf16.mxu0 0
  %624 = vmatpush1.bf16.msra.mxu0 %v480
  %625 = vmatprep.mubr.bf16.mxu0 %v194
  %626 = vmatmul.mubr.bf16.gmra.mrb[0].mxu0 %v193
  %v627 = vpop.f32.mrb[0].mxu0
  %v628 = vadd.f32 0.0, %v627
  %v629 = vpop.f32.mrb[0].mxu0
  %v630 = vpop.f32.mrb[0].mxu0
  %v631 = vadd.f32 0.0, %v630
  %v632 = vpop.f32.mrb[0].mxu0
  %633 = vdwg.mxu0
  %634 = vmatprep.subr.bf16.mxu0 0
  %635 = vmatpush1.bf16.msra.mxu0 %v481
  %636 = vmatprep.subr.bf16.mxu0 0
  %637 = vmatpush1.bf16.msra.mxu0 %v482
  %638 = vmatprep.subr.bf16.mxu0 0
  %639 = vmatpush1.bf16.msra.mxu0 %v483
  %640 = vmatprep.subr.bf16.mxu0 0
  %641 = vmatpush1.bf16.msra.mxu0 %v484
  %642 = vmatprep.subr.bf16.mxu0 0
  %643 = vmatpush1.bf16.msra.mxu0 %v485
  %644 = vmatprep.subr.bf16.mxu0 0
  %645 = vmatpush1.bf16.msra.mxu0 %v486
  %646 = vmatprep.subr.bf16.mxu0 0
  %647 = vmatpush1.bf16.msra.mxu0 %v487
  %648 = vmatprep.subr.bf16.mxu0 0
  %649 = vmatpush1.bf16.msra.mxu0 %v488
  %650 = vmatprep.subr.bf16.mxu0 0
  %651 = vmatpush1.bf16.msra.mxu0 %v489
  %652 = vmatprep.subr.bf16.mxu0 0
  %653 = vmatpush1.bf16.msra.mxu0 %v490
  %654 = vmatprep.subr.bf16.mxu0 0
  %655 = vmatpush1.bf16.msra.mxu0 %v491
  %656 = vmatprep.subr.bf16.mxu0 0
  %657 = vmatpush1.bf16.msra.mxu0 %v492
  %658 = vmatprep.subr.bf16.mxu0 0
  %659 = vmatpush1.bf16.msra.mxu0 %v493
  %660 = vmatprep.subr.bf16.mxu0 0
  %661 = vmatpush1.bf16.msra.mxu0 %v494
  %662 = vmatprep.subr.bf16.mxu0 0
  %663 = vmatpush1.bf16.msra.mxu0 %v495
  %664 = vmatprep.subr.bf16.mxu0 0
  %665 = vmatpush1.bf16.msra.mxu0 %v496
  %666 = vmatprep.mubr.bf16.mxu0 %v196
  %667 = vmatmul.mubr.bf16.gmra.mrb[0].mxu0 %v195
  %v668 = vpop.f32.mrb[0].mxu0
  %v669 = vadd.f32 %v628, %v668
  %v670 = vpop.f32.mrb[0].mxu0
  %v671 = vpop.f32.mrb[0].mxu0
  %v672 = vadd.f32 %v631, %v671
  %v673 = vpop.f32.mrb[0].mxu0
  %674 = vdwg.mxu0
  %675 = vmatprep.subr.bf16.mxu0 0
  %676 = vmatpush1.bf16.msra.mxu0 %v497
  %677 = vmatprep.subr.bf16.mxu0 0
  %678 = vmatpush1.bf16.msra.mxu0 %v498
  %679 = vmatprep.subr.bf16.mxu0 0
  %680 = vmatpush1.bf16.msra.mxu0 %v499
  %681 = vmatprep.subr.bf16.mxu0 0
  %682 = vmatpush1.bf16.msra.mxu0 %v500
  %683 = vmatprep.subr.bf16.mxu0 0
  %684 = vmatpush1.bf16.msra.mxu0 %v501
  %685 = vmatprep.subr.bf16.mxu0 0
  %686 = vmatpush1.bf16.msra.mxu0 %v502
  %687 = vmatprep.subr.bf16.mxu0 0
  %688 = vmatpush1.bf16.msra.mxu0 %v503
  %689 = vmatprep.subr.bf16.mxu0 0
  %690 = vmatpush1.bf16.msra.mxu0 %v504
  %691 = vmatprep.subr.bf16.mxu0 0
  %692 = vmatpush1.bf16.msra.mxu0 %v505
  %693 = vmatprep.subr.bf16.mxu0 0
  %694 = vmatpush1.bf16.msra.mxu0 %v506
  %695 = vmatprep.subr.bf16.mxu0 0
  %696 = vmatpush1.bf16.msra.mxu0 %v507
  %697 = vmatprep.subr.bf16.mxu0 0
  %698 = vmatpush1.bf16.msra.mxu0 %v508
  %699 = vmatprep.subr.bf16.mxu0 0
  %700 = vmatpush1.bf16.msra.mxu0 %v509
  %701 = vmatprep.subr.bf16.mxu0 0
  %702 = vmatpush1.bf16.msra.mxu0 %v510
  %703 = vmatprep.subr.bf16.mxu0 0
  %704 = vmatpush1.bf16.msra.mxu0 %v511
  %705 = vmatprep.subr.bf16.mxu0 0
  %706 = vmatpush1.bf16.msra.mxu0 %v512
  %707 = vmatprep.mubr.bf16.mxu0 %v198
  %708 = vmatmul.mubr.bf16.gmra.mrb[0].mxu0 %v197
  %v709 = vpop.f32.mrb[0].mxu0
  %v710 = vadd.f32 %v669, %v709
  %v711 = vpop.f32.mrb[0].mxu0
  %v712 = vpop.f32.mrb[0].mxu0
  %v713 = vadd.f32 %v672, %v712
  %v714 = vpop.f32.mrb[0].mxu0
  %715 = vdwg.mxu0
  %716 = vmatprep.subr.bf16.mxu0 0
  %717 = vmatpush1.bf16.msra.mxu0 %v513
  %718 = vmatprep.subr.bf16.mxu0 0
  %719 = vmatpush1.bf16.msra.mxu0 %v514
  %720 = vmatprep.subr.bf16.mxu0 0
  %721 = vmatpush1.bf16.msra.mxu0 %v515
  %722 = vmatprep.subr.bf16.mxu0 0
  %723 = vmatpush1.bf16.msra.mxu0 %v516
  %724 = vmatprep.subr.bf16.mxu0 0
  %725 = vmatpush1.bf16.msra.mxu0 %v517
  %726 = vmatprep.subr.bf16.mxu0 0
  %727 = vmatpush1.bf16.msra.mxu0 %v518
  %728 = vmatprep.subr.bf16.mxu0 0
  %729 = vmatpush1.bf16.msra.mxu0 %v519
  %730 = vmatprep.subr.bf16.mxu0 0
  %731 = vmatpush1.bf16.msra.mxu0 %v520
  %732 = vmatprep.subr.bf16.mxu0 0
  %733 = vmatpush1.bf16.msra.mxu0 %v521
  %734 = vmatprep.subr.bf16.mxu0 0
  %735 = vmatpush1.bf16.msra.mxu0 %v522
  %736 = vmatprep.subr.bf16.mxu0 0
  %737 = vmatpush1.bf16.msra.mxu0 %v523
  %738 = vmatprep.subr.bf16.mxu0 0
  %739 = vmatpush1.bf16.msra.mxu0 %v524
  %740 = vmatprep.subr.bf16.mxu0 0
  %741 = vmatpush1.bf16.msra.mxu0 %v525
  %742 = vmatprep.subr.bf16.mxu0 0
  %743 = vmatpush1.bf16.msra.mxu0 %v526
  %744 = vmatprep.subr.bf16.mxu0 0
  %745 = vmatpush1.bf16.msra.mxu0 %v527
  %746 = vmatprep.subr.bf16.mxu0 0
  %747 = vmatpush1.bf16.msra.mxu0 %v528
  %748 = vmatprep.mubr.bf16.mxu0 %v200
  %749 = vmatmul.mubr.bf16.gmra.mrb[0].mxu0 %v199
  %v750 = vpop.f32.mrb[0].mxu0
  %v751 = vadd.f32 %v710, %v750
  %v752 = vpop.f32.mrb[0].mxu0
  %v753 = vpop.f32.mrb[0].mxu0
  %v754 = vadd.f32 %v713, %v753
  %v755 = vpop.f32.mrb[0].mxu0
  %756 = vdwg.mxu0
  %v757 = vadd.f32 %v31, %v751
  %v758 = vadd.f32 %v32, %v754
  %759 = vst [vmem:[#allocation2] sm:$0xff] %v757
  %760 = vst [vmem:[#allocation2 + $0x8] sm:$0xff] %v758
  // Predicated region
  $region26: #{ori_clip_forward.1} parent=0 // pred_check
    %p761 = pneg %p25
  $region27: #{ori_clip_forward.1} parent=0 // pred_check_branch
    %763 = sbr.rel (%p761) target = $region29
  $region28: #{ori_clip_forward.1} parent=0 // pred_region
    %v764 = vld [vmem:[%s3] sm:$0xf]
    %v765 = vld [vmem:[%s3 + $0x4] sm:$0xf]
    %v766 = vld [vmem:[%s3 + $0x8] sm:$0xf]
    %v767 = vld [vmem:[%s3 + $0xc] sm:$0xf]
    %v768 = vld [vmem:[%s3 + $0x10] sm:$0xf]
    %v769 = vld [vmem:[%s3 + $0x14] sm:$0xf]
    %v770 = vld [vmem:[%s3 + $0x18] sm:$0xf]
    %v771 = vld [vmem:[%s3 + $0x1c] sm:$0xf]
    %v772 = vld [vmem:[%s3 + $0x20] sm:$0xf]
    %v773 = vld [vmem:[%s3 + $0x24] sm:$0xf]
    %v774 = vld [vmem:[%s3 + $0x28] sm:$0xf]
    %v775 = vld [vmem:[%s3 + $0x2c] sm:$0xf]
    %v776 = vld [vmem:[%s3 + $0x30] sm:$0xf]
    %v777 = vld [vmem:[%s3 + $0x34] sm:$0xf]
    %v778 = vld [vmem:[%s3 + $0x38] sm:$0xf]
    %v779 = vld [vmem:[%s3 + $0x3c] sm:$0xf]
    %v780 = vld [vmem:[%s4] sm:$0xf]
    %v781 = vld [vmem:[%s4 + $0x4] sm:$0xf]
    %v782 = vld [vmem:[%s4 + $0x8] sm:$0xf]
    %v783 = vld [vmem:[%s4 + $0xc] sm:$0xf]
    %v784 = vld [vmem:[%s4 + $0x10] sm:$0xf]
    %v785 = vld [vmem:[%s4 + $0x14] sm:$0xf]
    %v786 = vld [vmem:[%s4 + $0x18] sm:$0xf]
    %v787 = vld [vmem:[%s4 + $0x1c] sm:$0xf]
    %v788 = vld [vmem:[%s4 + $0x20] sm:$0xf]
    %v789 = vld [vmem:[%s4 + $0x24] sm:$0xf]
    %v790 = vld [vmem:[%s4 + $0x28] sm:$0xf]
    %v791 = vld [vmem:[%s4 + $0x2c] sm:$0xf]
    %v792 = vld [vmem:[%s4 + $0x30] sm:$0xf]
    %v793 = vld [vmem:[%s4 + $0x34] sm:$0xf]
    %v794 = vld [vmem:[%s4 + $0x38] sm:$0xf]
    %v795 = vld [vmem:[%s4 + $0x3c] sm:$0xf]
    %v812 = vunpack.c.l.b16 %v764
    %v813 = vunpack.c.l.b16 %v765
    %v814 = vunpack.c.l.b16 %v766
    %v815 = vunpack.c.l.b16 %v767
    %v816 = vunpack.c.l.b16 %v768
    %v817 = vunpack.c.l.b16 %v769
    %v818 = vunpack.c.l.b16 %v770
    %v819 = vunpack.c.l.b16 %v771
    %v820 = vunpack.c.l.b16 %v772
    %v821 = vunpack.c.l.b16 %v773
    %v822 = vunpack.c.l.b16 %v774
    %v823 = vunpack.c.l.b16 %v775
    %v824 = vunpack.c.l.b16 %v776
    %v825 = vunpack.c.l.b16 %v777
    %v826 = vunpack.c.l.b16 %v778
    %v827 = vunpack.c.l.b16 %v779
    %v828 = vpack.c.b16 %v813, %v812
    %v829 = vpack.c.b16 %v815, %v814
    %v830 = vpack.c.b16 %v817, %v816
    %v831 = vpack.c.b16 %v819, %v818
    %v832 = vpack.c.b16 %v821, %v820
    %v833 = vpack.c.b16 %v823, %v822
    %v834 = vpack.c.b16 %v825, %v824
    %v835 = vpack.c.b16 %v827, %v826
    %v860 = vunpack.c.l.b16 %v780
    %v861 = vunpack.c.l.b16 %v781
    %v862 = vunpack.c.l.b16 %v782
    %v863 = vunpack.c.l.b16 %v783
    %v864 = vunpack.c.l.b16 %v784
    %v865 = vunpack.c.l.b16 %v785
    %v866 = vunpack.c.l.b16 %v786
    %v867 = vunpack.c.l.b16 %v787
    %v868 = vunpack.c.l.b16 %v788
    %v869 = vunpack.c.l.b16 %v789
    %v870 = vunpack.c.l.b16 %v790
    %v871 = vunpack.c.l.b16 %v791
    %v872 = vunpack.c.l.b16 %v792
    %v873 = vunpack.c.l.b16 %v793
    %v874 = vunpack.c.l.b16 %v794
    %v875 = vunpack.c.l.b16 %v795
    %v876 = vpack.c.b16 %v861, %v860
    %v877 = vpack.c.b16 %v863, %v862
    %v878 = vpack.c.b16 %v865, %v864
    %v879 = vpack.c.b16 %v867, %v866
    %v880 = vpack.c.b16 %v869, %v868
    %v881 = vpack.c.b16 %v871, %v870
    %v882 = vpack.c.b16 %v873, %v872
    %v883 = vpack.c.b16 %v875, %v874
    %892 = vmatprep.subr.bf16.mxu0 0
    %893 = vmatpush1.bf16.msra.mxu0 %v876
    %894 = vmatprep.subr.bf16.mxu0 0
    %895 = vmatpush1.bf16.msra.mxu0 %v877
    %896 = vmatprep.subr.bf16.mxu0 0
    %897 = vmatpush1.bf16.msra.mxu0 %v878
    %898 = vmatprep.subr.bf16.mxu0 0
    %899 = vmatpush1.bf16.msra.mxu0 %v879
    %900 = vmatprep.subr.bf16.mxu0 0
    %901 = vmatpush1.bf16.msra.mxu0 %v880
    %902 = vmatprep.subr.bf16.mxu0 0
    %903 = vmatpush1.bf16.msra.mxu0 %v881
    %904 = vmatprep.subr.bf16.mxu0 0
    %905 = vmatpush1.bf16.msra.mxu0 %v882
    %906 = vmatprep.subr.bf16.mxu0 0
    %907 = vmatpush1.bf16.msra.mxu0 %v883
    %908 = vmatprep.subr.bf16.mxu0 0
    %909 = vmatpush1.bf16.msra.mxu0 0
    %910 = vmatprep.subr.bf16.mxu0 0
    %911 = vmatpush1.bf16.msra.mxu0 0
    %912 = vmatprep.subr.bf16.mxu0 0
    %913 = vmatpush1.bf16.msra.mxu0 0
    %914 = vmatprep.subr.bf16.mxu0 0
    %915 = vmatpush1.bf16.msra.mxu0 0
    %916 = vmatprep.subr.bf16.mxu0 0
    %917 = vmatpush1.bf16.msra.mxu0 0
    %918 = vmatprep.subr.bf16.mxu0 0
    %919 = vmatpush1.bf16.msra.mxu0 0
    %920 = vmatprep.subr.bf16.mxu0 0
    %921 = vmatpush1.bf16.msra.mxu0 0
    %922 = vmatprep.subr.bf16.mxu0 0
    %923 = vmatpush1.bf16.msra.mxu0 0
    %924 = vmatprep.mubr.bf16.mxu0 0
    %925 = vmatmul.mubr.bf16.gmra.mrb[0].mxu0 %v828
    %v926 = vpop.f32.mrb[0].mxu0
    %v927 = vadd.f32 0.0, %v926
    %v928 = vpop.f32.mrb[0].mxu0
    %v929 = vpop.f32.mrb[0].mxu0
    %v930 = vadd.f32 0.0, %v929
    %v931 = vpop.f32.mrb[0].mxu0
    %932 = vmatprep.mubr.bf16.mxu0 0
    %933 = vmatmul.mubr.bf16.gmra.mrb[0].mxu0 %v829
    %v934 = vpop.f32.mrb[0].mxu0
    %v935 = vadd.f32 0.0, %v934
    %v936 = vpop.f32.mrb[0].mxu0
    %v937 = vpop.f32.mrb[0].mxu0
    %v938 = vadd.f32 0.0, %v937
    %v939 = vpop.f32.mrb[0].mxu0
    %940 = vmatprep.mubr.bf16.mxu0 0
    %941 = vmatmul.mubr.bf16.gmra.mrb[0].mxu0 %v830
    %v942 = vpop.f32.mrb[0].mxu0
    %v943 = vadd.f32 0.0, %v942
    %v944 = vpop.f32.mrb[0].mxu0
    %v945 = vpop.f32.mrb[0].mxu0
    %v946 = vadd.f32 0.0, %v945
    %v947 = vpop.f32.mrb[0].mxu0
    %948 = vmatprep.mubr.bf16.mxu0 0
    %949 = vmatmul.mubr.bf16.gmra.mrb[0].mxu0 %v831
    %v950 = vpop.f32.mrb[0].mxu0
    %v951 = vadd.f32 0.0, %v950
    %v952 = vpop.f32.mrb[0].mxu0
    %v953 = vpop.f32.mrb[0].mxu0
    %v954 = vadd.f32 0.0, %v953
    %v955 = vpop.f32.mrb[0].mxu0
    %956 = vmatprep.mubr.bf16.mxu0 0
    %957 = vmatmul.mubr.bf16.gmra.mrb[0].mxu0 %v832
    %v958 = vpop.f32.mrb[0].mxu0
    %v959 = vadd.f32 0.0, %v958
    %v960 = vpop.f32.mrb[0].mxu0
    %v961 = vpop.f32.mrb[0].mxu0
    %v962 = vadd.f32 0.0, %v961
    %v963 = vpop.f32.mrb[0].mxu0
    %964 = vmatprep.mubr.bf16.mxu0 0
    %965 = vmatmul.mubr.bf16.gmra.mrb[0].mxu0 %v833
    %v966 = vpop.f32.mrb[0].mxu0
    %v967 = vadd.f32 0.0, %v966
    %v968 = vpop.f32.mrb[0].mxu0
    %v969 = vpop.f32.mrb[0].mxu0
    %v970 = vadd.f32 0.0, %v969
    %v971 = vpop.f32.mrb[0].mxu0
    %972 = vmatprep.mubr.bf16.mxu0 0
    %973 = vmatmul.mubr.bf16.gmra.mrb[0].mxu0 %v834
    %v974 = vpop.f32.mrb[0].mxu0
    %v975 = vadd.f32 0.0, %v974
    %v976 = vpop.f32.mrb[0].mxu0
    %v977 = vpop.f32.mrb[0].mxu0
    %v978 = vadd.f32 0.0, %v977
    %v979 = vpop.f32.mrb[0].mxu0
    %980 = vmatprep.mubr.bf16.mxu0 0
    %981 = vmatmul.mubr.bf16.gmra.mrb[0].mxu0 %v835
    %v982 = vpop.f32.mrb[0].mxu0
    %v983 = vadd.f32 0.0, %v982
    %v984 = vpop.f32.mrb[0].mxu0
    %v985 = vpop.f32.mrb[0].mxu0
    %v986 = vadd.f32 0.0, %v985
    %v987 = vpop.f32.mrb[0].mxu0
    %988 = vdwg.mxu0
    %v989 = vld [vmem:[#allocation2] sm:$0xff]
    %v990 = vld [vmem:[#allocation2 + $0x8] sm:$0xff]
    %v991 = vmul.f32 %v989, %v989
    %v992 = vmul.f32 %v990, %v990
    %993 = vadd.xlane.f32.xlu0 %v991
    %v994 = vpop.xlane.xlu0 %993
    %995 = vadd.xlane.f32.xlu0 %v992
    %v996 = vpop.xlane.xlu0 %995
    %v997 = vadd.f32 %v994, 1e-30
    %v998 = vadd.f32 %v996, 1e-30
    %v999 = vrsqrt.pop %v997
    %v1000 = vrsqrt.pop %v998
    %v1001 = vmul.f32 %v989, %v999
    %v1002 = vmul.f32 %v990, %v1000
    %v1003 = vmul.f32 %v927, %v927
    %v1004 = vmul.f32 %v930, %v930
    %v1005 = vmul.f32 %v935, %v935
    %v1006 = vmul.f32 %v938, %v938
    %v1007 = vmul.f32 %v943, %v943
    %v1008 = vmul.f32 %v946, %v946
    %v1009 = vmul.f32 %v951, %v951
    %v1010 = vmul.f32 %v954, %v954
    %v1011 = vmul.f32 %v959, %v959
    %v1012 = vmul.f32 %v962, %v962
    %v1013 = vmul.f32 %v967, %v967
    %v1014 = vmul.f32 %v970, %v970
    %v1015 = vmul.f32 %v975, %v975
    %v1016 = vmul.f32 %v978, %v978
    %v1017 = vmul.f32 %v983, %v983
    %v1018 = vmul.f32 %v986, %v986
    %1019 = vadd.xlane.f32.xlu0 %v1003
    %v1020 = vpop.xlane.xlu0 %1019
    %1021 = vadd.xlane.f32.xlu0 %v1004
    %v1022 = vpop.xlane.xlu0 %1021
    %1023 = vadd.xlane.f32.xlu0 %v1005
    %v1024 = vpop.xlane.xlu0 %1023
    %1025 = vadd.xlane.f32.xlu0 %v1006
    %v1026 = vpop.xlane.xlu0 %1025
    %1027 = vadd.xlane.f32.xlu0 %v1007
    %v1028 = vpop.xlane.xlu0 %1027
    %1029 = vadd.xlane.f32.xlu0 %v1008
    %v1030 = vpop.xlane.xlu0 %1029
    %1031 = vadd.xlane.f32.xlu0 %v1009
    %v1032 = vpop.xlane.xlu0 %1031
    %1033 = vadd.xlane.f32.xlu0 %v1010
    %v1034 = vpop.xlane.xlu0 %1033
    %1035 = vadd.xlane.f32.xlu0 %v1011
    %v1036 = vpop.xlane.xlu0 %1035
    %1037 = vadd.xlane.f32.xlu0 %v1012
    %v1038 = vpop.xlane.xlu0 %1037
    %1039 = vadd.xlane.f32.xlu0 %v1013
    %v1040 = vpop.xlane.xlu0 %1039
    %1041 = vadd.xlane.f32.xlu0 %v1014
    %v1042 = vpop.xlane.xlu0 %1041
    %1043 = vadd.xlane.f32.xlu0 %v1015
    %v1044 = vpop.xlane.xlu0 %1043
    %1045 = vadd.xlane.f32.xlu0 %v1016
    %v1046 = vpop.xlane.xlu0 %1045
    %1047 = vadd.xlane.f32.xlu0 %v1017
    %v1048 = vpop.xlane.xlu0 %1047
    %1049 = vadd.xlane.f32.xlu0 %v1018
    %v1050 = vpop.xlane.xlu0 %1049
    %v1051 = vadd.f32 %v1020, 1e-30
    %v1052 = vadd.f32 %v1022, 1e-30
    %v1053 = vadd.f32 %v1024, 1e-30
    %v1054 = vadd.f32 %v1026, 1e-30
    %v1055 = vadd.f32 %v1028, 1e-30
    %v1056 = vadd.f32 %v1030, 1e-30
    %v1057 = vadd.f32 %v1032, 1e-30
    %v1058 = vadd.f32 %v1034, 1e-30
    %v1059 = vadd.f32 %v1036, 1e-30
    %v1060 = vadd.f32 %v1038, 1e-30
    %v1061 = vadd.f32 %v1040, 1e-30
    %v1062 = vadd.f32 %v1042, 1e-30
    %v1063 = vadd.f32 %v1044, 1e-30
    %v1064 = vadd.f32 %v1046, 1e-30
    %v1065 = vadd.f32 %v1048, 1e-30
    %v1066 = vadd.f32 %v1050, 1e-30
    %v1067 = vrsqrt.pop %v1051
    %v1068 = vrsqrt.pop %v1052
    %v1069 = vrsqrt.pop %v1053
    %v1070 = vrsqrt.pop %v1054
    %v1071 = vrsqrt.pop %v1055
    %v1072 = vrsqrt.pop %v1056
    %v1073 = vrsqrt.pop %v1057
    %v1074 = vrsqrt.pop %v1058
    %v1075 = vrsqrt.pop %v1059
    %v1076 = vrsqrt.pop %v1060
    %v1077 = vrsqrt.pop %v1061
    %v1078 = vrsqrt.pop %v1062
    %v1079 = vrsqrt.pop %v1063
    %v1080 = vrsqrt.pop %v1064
    %v1081 = vrsqrt.pop %v1065
    %v1082 = vrsqrt.pop %v1066
    %v1083 = vmul.f32 %v927, %v1067
    %v1084 = vmul.f32 %v930, %v1068
    %v1085 = vmul.f32 %v935, %v1069
    %v1086 = vmul.f32 %v938, %v1070
    %v1087 = vmul.f32 %v943, %v1071
    %v1088 = vmul.f32 %v946, %v1072
    %v1089 = vmul.f32 %v951, %v1073
    %v1090 = vmul.f32 %v954, %v1074
    %v1091 = vmul.f32 %v959, %v1075
    %v1092 = vmul.f32 %v962, %v1076
    %v1093 = vmul.f32 %v967, %v1077
    %v1094 = vmul.f32 %v970, %v1078
    %v1095 = vmul.f32 %v975, %v1079
    %v1096 = vmul.f32 %v978, %v1080
    %v1097 = vmul.f32 %v983, %v1081
    %v1098 = vmul.f32 %v986, %v1082
    %s1099 = sld [smem:[#allocation3]]
    %v1100 = vpack.c.bf16 %v1002, %v1001
    %v1101 = vpack.c.bf16 %v1084, %v1083
    %v1102 = vpack.c.bf16 %v1086, %v1085
    %v1103 = vpack.c.bf16 %v1088, %v1087
    %v1104 = vpack.c.bf16 %v1090, %v1089
    %v1105 = vpack.c.bf16 %v1092, %v1091
    %v1106 = vpack.c.bf16 %v1094, %v1093
    %v1107 = vpack.c.bf16 %v1096, %v1095
    %v1108 = vpack.c.bf16 %v1098, %v1097
    %1109 = vmatprep.subr.bf16.mxu0 0
    %1110 = vmatpush1.bf16.xpose.msra.mxu0 %v1101
    %1111 = vmatprep.subr.bf16.mxu0 0
    %1112 = vmatpush1.bf16.xpose.msra.mxu0 %v1102
    %1113 = vmatprep.subr.bf16.mxu0 0
    %1114 = vmatpush1.bf16.xpose.msra.mxu0 %v1103
    %1115 = vmatprep.subr.bf16.mxu0 0
    %1116 = vmatpush1.bf16.xpose.msra.mxu0 %v1104
    %1117 = vmatprep.subr.bf16.mxu0 0
    %1118 = vmatpush1.bf16.xpose.msra.mxu0 %v1105
    %1119 = vmatprep.subr.bf16.mxu0 0
    %1120 = vmatpush1.bf16.xpose.msra.mxu0 %v1106
    %1121 = vmatprep.subr.bf16.mxu0 0
    %1122 = vmatpush1.bf16.xpose.msra.mxu0 %v1107
    %1123 = vmatprep.subr.bf16.mxu0 0
    %1124 = vmatpush1.bf16.xpose.msra.mxu0 %v1108
    %1125 = vmatprep.subr.bf16.mxu0 0
    %1126 = vmatpush1.bf16.xpose.msra.mxu0 0
    %1127 = vmatprep.subr.bf16.mxu0 0
    %1128 = vmatpush1.bf16.xpose.msra.mxu0 0
    %1129 = vmatprep.subr.bf16.mxu0 0
    %1130 = vmatpush1.bf16.xpose.msra.mxu0 0
    %1131 = vmatprep.subr.bf16.mxu0 0
    %1132 = vmatpush1.bf16.xpose.msra.mxu0 0
    %1133 = vmatprep.subr.bf16.mxu0 0
    %1134 = vmatpush1.bf16.xpose.msra.mxu0 0
    %1135 = vmatprep.subr.bf16.mxu0 0
    %1136 = vmatpush1.bf16.xpose.msra.mxu0 0
    %1137 = vmatprep.subr.bf16.mxu0 0
    %1138 = vmatpush1.bf16.xpose.msra.mxu0 0
    %1139 = vmatprep.subr.bf16.mxu0 0
    %1140 = vmatpush1.bf16.xpose.msra.mxu0 0
    %1141 = vmatprep.mubr.bf16.mxu0 0
    %1142 = vmatmul.mubr.bf16.gmra.mrb[0].mxu0 %v1100
    %v1143 = vpop.f32.mrb[0].mxu0
    %v1144 = vadd.f32 0.0, %v1143
    %v1145 = vpop.f32.mrb[0].mxu0
    %v1146 = vpop.f32.mrb[0].mxu0
    %v1147 = vadd.f32 0.0, %v1146
    %v1148 = vpop.f32.mrb[0].mxu0
    %1149 = vdwg.mxu0
    %v1150 = vstv %s1099
    %v1151 = vmul.f32 %v1150, %v1144
    %v1152 = vmul.f32 %v1150, %v1147
    %1153 = vst [vmem:[%s5] sm:$0xff] %v1151
    %1154 = vst [vmem:[%s5 + $0x8] sm:$0xff] %v1152
    %1155 = vst [vmem:[%s6] sm:$0xff] %v1001
    %1156 = vst [vmem:[%s6 + $0x8] sm:$0xff] %v1002
    %1157 = vst [vmem:[%s7] sm:$0xff] %v1083
    %1158 = vst [vmem:[%s7 + $0x8] sm:$0xff] %v1084
    %1159 = vst [vmem:[%s7 + $0x10] sm:$0xff] %v1085
    %1160 = vst [vmem:[%s7 + $0x18] sm:$0xff] %v1086
    %1161 = vst [vmem:[%s7 + $0x20] sm:$0xff] %v1087
    %1162 = vst [vmem:[%s7 + $0x28] sm:$0xff] %v1088
    %1163 = vst [vmem:[%s7 + $0x30] sm:$0xff] %v1089
    %1164 = vst [vmem:[%s7 + $0x38] sm:$0xff] %v1090
    %1165 = vst [vmem:[%s7 + $0x40] sm:$0xff] %v1091
    %1166 = vst [vmem:[%s7 + $0x48] sm:$0xff] %v1092
    %1167 = vst [vmem:[%s7 + $0x50] sm:$0xff] %v1093
    %1168 = vst [vmem:[%s7 + $0x58] sm:$0xff] %v1094
    %1169 = vst [vmem:[%s7 + $0x60] sm:$0xff] %v1095
    %1170 = vst [vmem:[%s7 + $0x68] sm:$0xff] %v1096
    %1171 = vst [vmem:[%s7 + $0x70] sm:$0xff] %v1097
    %1172 = vst [vmem:[%s7 + $0x78] sm:$0xff] %v1098
  $region29: #{ori_clip_forward.1} parent=0 // pred_fallthru
    _
  // Predicated region
  $region30: #{ori_clip_forward.1} parent=0 // pred_check
    _
  $region31: #{ori_clip_forward.1} parent=0 // pred_check_branch
    %1174 = sbr.rel (0) target = $region33
  $region32: #{ori_clip_forward.1} parent=0 // pred_region
    _
  $region33: #{ori_clip_forward.1} parent=0 // pred_fallthru
    _
  // Predicated region
  $region34: #{ori_clip_forward.1} parent=0 // pred_check
    _
  $region35: #{ori_clip_forward.1} parent=0 // pred_check_branch
    %1176 = sbr.rel (0) target = $region37
  $region36: #{ori_clip_forward.1} parent=0 // pred_region
    _
  $region37: #{ori_clip_forward.1} parent=0 // pred_fallthru
    _
  // Predicated region
  $region38: #{ori_clip_forward.1} parent=0 // pred_check
    _
  $region39: #{ori_clip_forward.1} parent=0 // pred_check_branch
    %1178 = sbr.rel (0) target = $region41
  $region40: #{ori_clip_forward.1} parent=0 // pred_region
    _
  $region41: #{ori_clip_forward.1} parent=0 // pred_fallthru
    _
  // Predicated region
  $region42: #{ori_clip_forward.1} parent=0 // pred_check
    _
  $region43: #{ori_clip_forward.1} parent=0 // pred_check_branch
    %1180 = sbr.rel (0) target = $region45
  $region44: #{ori_clip_forward.1} parent=0 // pred_region
    _
  $region45: #{ori_clip_forward.1} parent=0 // pred_fallthru
    _
  // Predicated region
  $region46: #{ori_clip_forward.1} parent=0 // pred_check
    _
  $region47: #{ori_clip_forward.1} parent=0 // pred_check_branch
    %1182 = sbr.rel (0) target = $region49
  $region48: #{ori_clip_forward.1} parent=0 // pred_region
    _
  $region49: #{ori_clip_forward.1} parent=0 // pred_fallthru
    _
  // Predicated region
  $region50: #{ori_clip_forward.1} parent=0 // pred_check
    _
  $region51: #{ori_clip_forward.1} parent=0 // pred_check_branch
    %1184 = sbr.rel (0) target = $region53
  $region52: #{ori_clip_forward.1} parent=0 // pred_region
    _
  $region53: #{ori_clip_forward.1} parent=0 // pred_fallthru
    _

</llo_original>
